<compile_context>
chip_gen: v7x
topology: tpu7x:2x2x1
jax: 0.10.0
libtpu: 0.0.40
codegen_flags: <defaults>
</compile_context>

<pallas_src>
import functools

import jax
import jax.numpy as jnp
from jax.experimental import pallas as pl
from jax.experimental.pallas import tpu as pltpu


def _gem_kernel(x_ref, o_ref, *, p, eps, inv_hw):
    # x_ref: (Cb, H*W) block for one sample n; o_ref: (Cb, 1).
    x = x_ref[...].astype(jnp.float32)
    x = jnp.clip(x, eps, 10000.0)
    # x^p for strictly-positive x and float p  ->  exp(p * log(x))  (EUP).
    xp = jnp.exp(jnp.log(x) * p)
    s = jnp.sum(xp, axis=-1, keepdims=True)     # lane reduce -> (Cb, 1)
    mean = s * inv_hw
    out = jnp.abs(jnp.exp(jnp.log(mean) * (1.0 / p)))
    o_ref[...] = out.astype(o_ref.dtype)


def gem_const(x, p=3.74, eps=1e-6):
    """GeM pooling: x (N, C, H, W) -> (N, C, 1, 1), matching the PyTorch module."""
    N, C, H, W = x.shape
    HW = H * W
    # Free reshape for contiguous NCHW: flatten the spatial plane onto lanes.
    xf = x.reshape(N, C, HW)

    itemsize = jnp.dtype(x.dtype).itemsize
    # Padded tile footprint: lane dim rounds to 128, sublane dim rounds to the
    # dtype's packing multiple (8 for f32, 16 for bf16, 32 for int8).
    sub_mult = 8 * (4 // itemsize)
    hw_padded = pl.cdiv(HW, 128) * 128
    per_chan_bytes = hw_padded * itemsize

    def padded_block_bytes(cb):
        return pl.cdiv(cb, sub_mult) * sub_mult * per_chan_bytes

    # Generation-aware VMEM budget for the (double-buffered) input stream:
    # ~24 MiB on v7x (64 MiB/TC), ~48 MiB on v5e/v6e (128 MiB/TC).
    try:
        vmem_cap = int(pltpu.get_tpu_info().vmem_capacity_bytes)
    except Exception:  # fall back to the most conservative (v7x) assumption
        vmem_cap = 64 * 1024 * 1024
    stream_budget = min(vmem_cap * 3 // 8, 48 * 1024 * 1024)
    per_buf_budget = stream_budget // 2

    cb_max = max(1, per_buf_budget // per_chan_bytes)
    Cb = min(C, cb_max)
    if Cb < C:
        # Keep partial blocks tidy on the sublane axis (pure perf, not required).
        Cb = max(sub_mult, (Cb // sub_mult) * sub_mult)
        Cb = min(Cb, C)
    n_cblk = pl.cdiv(C, Cb)

    # Megacore (v7x) heuristic: keep the total step count even so the two
    # TensorCores split the grid cleanly.  No effect on single-TC v5e/v6e.
    if (N * n_cblk) % 2 == 1 and C > n_cblk:
        Cb = pl.cdiv(C, n_cblk + 1)
        n_cblk = pl.cdiv(C, Cb)

    grid = (N, n_cblk)
    block_bytes = padded_block_bytes(Cb)
    vmem_limit = min(vmem_cap, max(32 * 1024 * 1024, 2 * block_bytes + (8 << 20)))

    kernel = functools.partial(
        _gem_kernel, p=float(p), eps=float(eps), inv_hw=1.0 / float(HW)
    )

    out = pl.pallas_call(
        kernel,
        out_shape=jax.ShapeDtypeStruct((N, C, 1), x.dtype),
        grid_spec=pltpu.PrefetchScalarGridSpec(
            num_scalar_prefetch=0,
            grid=grid,
            in_specs=[
                # Last (lane) dim takes the full H*W extent, so no (8,128)
                # divisibility constraint applies to it.
                pl.BlockSpec((None, Cb, HW), lambda n, c: (n, c, 0)),
            ],
            out_specs=pl.BlockSpec((None, Cb, 1), lambda n, c: (n, c, 0)),
        ),
        compiler_params=pltpu.CompilerParams(
            dimension_semantics=("parallel", "parallel"),
            vmem_limit_bytes=int(vmem_limit),
        ),
    )(xf)
    return out.reshape(N, C, 1, 1)


def _reference(x, p=3.74, eps=1e-6):
    # Pure-JAX reference of the PyTorch module.
    xc = jnp.clip(x, eps, 10000.0)
    m = jnp.mean(xc ** p, axis=(2, 3), keepdims=True)
    return jnp.abs(m ** (1.0 / p)).astype(x.dtype)


if __name__ == "__main__":
    key = jax.random.PRNGKey(0)
    N, C, H, W = 2, 4, 16, 16
    x = jax.random.normal(key, (N, C, H, W), dtype=jnp.float32)

    out = jax.block_until_ready(gem_const(x, p=3.74, eps=1e-6))
    ref = _reference(x, p=3.74, eps=1e-6)

    assert out.shape == (N, C, 1, 1), out.shape
    assert jnp.allclose(out, ref, rtol=1e-5, atol=1e-5), float(
        jnp.max(jnp.abs(out - ref))
    )

    print("KERNEL_OK")
</pallas_src>

<mosaic_0001>
module attributes {stable_mosaic.version = 11 : i64} {
  func.func @_gem_kernel(%arg0: i32, %arg1: i32, %arg2: memref<1x4x256xf32, #tpu.memory_space<vmem>>, %arg3: memref<1x4x1xf32, #tpu.memory_space<vmem>>) attributes {dimension_semantics = [#tpu.dimension_semantics<parallel>, #tpu.dimension_semantics<parallel>], iteration_bounds = array<i64: 2, 1>, scalar_prefetch = 0 : i64, scratch_operands = 0 : i64, tpu.core_type = #tpu.core_type<tc>, window_params = [{transform_indices = @transform_0, window_bounds = array<i64: 1, 4, 256>}, {transform_indices = @transform_1, window_bounds = array<i64: 1, 4, 1>}]} {
    %c0 = arith.constant 0 : index
    %c0_0 = arith.constant 0 : index
    %c0_1 = arith.constant 0 : index
    %0 = vector.load %arg2[%c0, %c0_0, %c0_1] : memref<1x4x256xf32, #tpu.memory_space<vmem>>, vector<1x4x256xf32>
    %1 = vector.shape_cast %0 : vector<1x4x256xf32> to vector<4x256xf32>
    %cst = arith.constant 9.99999997E-7 : f32
    %cst_2 = arith.constant 1.000000e+04 : f32
    %2 = vector.broadcast %cst : f32 to vector<4x256xf32>
    %3 = arith.maximumf %2, %1 : vector<4x256xf32>
    %4 = vector.broadcast %cst_2 : f32 to vector<4x256xf32>
    %5 = arith.minimumf %4, %3 : vector<4x256xf32>
    %6 = math.log %5 : vector<4x256xf32>
    %cst_3 = arith.constant 3.740000e+00 : f32
    %7 = vector.broadcast %cst_3 : f32 to vector<4x256xf32>
    %8 = arith.mulf %6, %7 : vector<4x256xf32>
    %9 = math.exp %8 : vector<4x256xf32>
    %cst_4 = arith.constant dense<0.000000e+00> : vector<4xf32>
    %10 = vector.multi_reduction <add>, %9, %cst_4 [1] : vector<4x256xf32> to vector<4xf32>
    %11 = vector.shape_cast %10 : vector<4xf32> to vector<4x1xf32>
    %cst_5 = arith.constant 3.906250e-03 : f32
    %12 = vector.broadcast %cst_5 : f32 to vector<4x1xf32>
    %13 = arith.mulf %11, %12 : vector<4x1xf32>
    %14 = math.log %13 : vector<4x1xf32>
    %cst_6 = arith.constant 0.267379671 : f32
    %15 = vector.broadcast %cst_6 : f32 to vector<4x1xf32>
    %16 = arith.mulf %14, %15 : vector<4x1xf32>
    %17 = math.exp %16 : vector<4x1xf32>
    %18 = math.absf %17 : vector<4x1xf32>
    %c0_7 = arith.constant 0 : index
    %c0_8 = arith.constant 0 : index
    %c0_9 = arith.constant 0 : index
    %19 = vector.load %arg3[%c0_7, %c0_8, %c0_9] : memref<1x4x1xf32, #tpu.memory_space<vmem>>, vector<1x4x1xf32>
    %20 = vector.shape_cast %19 : vector<1x4x1xf32> to vector<4x1xf32>
    %21 = vector.shape_cast %18 : vector<4x1xf32> to vector<1x4x1xf32>
    tpu.vector_store %arg3[%c0_7, %c0_8, %c0_9], %21 {strides = array<i32>} : memref<1x4x1xf32, #tpu.memory_space<vmem>>, vector<1x4x1xf32>,
    return
  }
  func.func @transform_0(%arg0: i32, %arg1: i32) -> (i32, i32, i32) {
    %c0_i32 = arith.constant 0 : i32
    %c0_i32_0 = arith.constant 0 : i32
    return %arg0, %arg1, %c0_i32 : i32, i32, i32
  }
  func.func @transform_1(%arg0: i32, %arg1: i32) -> (i32, i32, i32) {
    %c0_i32 = arith.constant 0 : i32
    %c0_i32_0 = arith.constant 0 : i32
    return %arg0, %arg1, %c0_i32 : i32, i32, i32
  }
}

</mosaic_0001>

<llo_original>
// kernel: tpu_custom_call.1
$region0: #{tpu_custom_call.1}
  #allocation0 [shape = 'u32[]', space=smem, size = 0x4, offset = 0x4, fixed_abs, tag = 'smem constant byte address 0x4 - core index']
  #allocation1 [shape = 'u32[144,128]{1,0:T(1,128)}', space=vmem, size = 0x12000, scoped, tag = 'internal scratch']
  %s0 = inlined_call_operand.hbm [shape: f32[2,4,256], index: 0, kind: input, shape index: {}]
  %s1 = inlined_call_operand.vmem [shape: f32[2,4,1], index: 1, kind: output, shape index: {}]
  %s2 = sld [smem:[#allocation0]]
  $region41: #{tpu_custom_call.1} parent=0
    _
  %s4 = ssub.s32 1, %s2
  %s5 = scalar_select 0, %s4, %s2
  $region1: #{tpu_custom_call.1} parent=0
    #allocation2 [shape = 'u8[8192]{0}', space=vmem, size = 0x2000, scoped, tag = 'input window, operand 0']
    #allocation3 [shape = 's32[2]{0}', space=sflag, size = 0x8, scoped, tag = 'scoped memory for tpu_custom_call.1']
    %6 = vsyncpa [#allocation3], 0
    %s7 = scalar_lea.sflag [#allocation3], 1
    %8 = vsyncpa %s7, 0
    loop: start=0, step=1, limit=4
    $region2: #{tpu_custom_call.1} parent=1 // loop_pre_header
      _
    $region3: #{tpu_custom_call.1} parent=1 // loop_header
      %s10 = sphi 0, %s14
      %p11 = scmp.ge.s32.totalorder %s10, 4
      %s17 = sphi 0, %s29
      %s18 = sphi 0, %s25
      %s19 = sphi 0, %s17
      %s20 = sphi 0, %s18
      %s21 = sphi 0, %s19
      %s22 = sphi 0, %s20
      %s34 = sphi 0, %s36
      %s37 = sphi 0, %s34
      %s38 = sphi 0, %s37
      %s54 = sphi 0, %s38
      %s62 = sphi 0, %s64
      %s65 = sphi 0, %s62
      %s66 = sphi 0, %s65
      %s82 = sphi 0, %s66
    $region4: #{tpu_custom_call.1} parent=1 // loop_header_branch
      %13 = sbr.rel (%p11) target = $region8
    $region5: #{tpu_custom_call.1} parent=1 // loop_body
      %s15 = ssub.s32 %s10, 1
      %s16 = ssub.s32 %s10, 2
      %s23 = sadd.s32 1, %s18
      %p24 = scmp.ge.s32.totalorder %s23, 1
      %s25 = scalar_select %p24, 0, %s23
      %s26 = sadd.s32 1, %s17
      %s27 = scalar_select %p24, %s26, %s17
      %p28 = scmp.ge.s32.totalorder %s27, 2
      %s29 = scalar_select %p28, 0, %s27
      %s30 = ssub.s32 %s17, %s29
      %s31 = ssub.s32 %s18, %s25
      %s32 = sor.u32 %s30, %s31
      %p33 = scmp.eq.s32.totalorder %s32, 0
      %s35 = sadd.s32 %s34, 1
      %s36 = scalar_select %p33, %s34, %s35
      %p39 = pneg %p33
      %p40 = scmp.eq.s32.totalorder %s10, 1
      %p41 = por %p39, %p40
      %p42 = scmp.ne.s32.totalorder %s34, %s37
      %p43 = scmp.eq.s32.totalorder %s10, 0
      %p44 = por %p42, %p43
      %p45 = scmp.ne.s32.totalorder %s34, %s37
      %p46 = scmp.eq.s32.totalorder %s15, 1
      %p47 = por %p45, %p46
      %p48 = scmp.ne.s32.totalorder %s37, %s38
      %p49 = scmp.eq.s32.totalorder %s15, 0
      %p50 = por %p48, %p49
      %p51 = scmp.ne.s32.totalorder %s37, %s38
      %p52 = scmp.eq.s32.totalorder %s16, 1
      %p53 = por %p51, %p52
      %p55 = scmp.ne.s32.totalorder %s38, %s54
      %p56 = scmp.eq.s32.totalorder %s16, 0
      %p57 = por %p55, %p56
      %s58 = ssub.s32 %s17, %s29
      %s59 = ssub.s32 %s18, %s25
      %s60 = sor.u32 %s58, %s59
      %p61 = scmp.eq.s32.totalorder %s60, 0
      %s63 = sadd.s32 %s62, 1
      %s64 = scalar_select %p61, %s62, %s63
      %p67 = pneg %p61
      %p68 = scmp.eq.s32.totalorder %s10, 1
      %p69 = por %p67, %p68
      %p70 = scmp.ne.s32.totalorder %s62, %s65
      %p71 = scmp.eq.s32.totalorder %s10, 0
      %p72 = por %p70, %p71
      %p73 = scmp.ne.s32.totalorder %s62, %s65
      %p74 = scmp.eq.s32.totalorder %s15, 1
      %p75 = por %p73, %p74
      %p76 = scmp.ne.s32.totalorder %s65, %s66
      %p77 = scmp.eq.s32.totalorder %s15, 0
      %p78 = por %p76, %p77
      %p79 = scmp.ne.s32.totalorder %s65, %s66
      %p80 = scmp.eq.s32.totalorder %s16, 1
      %p81 = por %p79, %p80
      %p83 = scmp.ne.s32.totalorder %s66, %s82
      %p84 = scmp.eq.s32.totalorder %s16, 0
      %p85 = por %p83, %p84
      %p86 = scmp.le.s32.totalorder 1, %s10
      %p87 = scmp.lt.s32.totalorder %s10, 3
      %p88 = pnand %p86, %p87
      %p89 = pneg %p88
      // Predicated region
      $region9: #{tpu_custom_call.1} parent=5 // pred_check
        _
      $region10: #{tpu_custom_call.1} parent=5 // pred_check_branch
        %91 = sbr.rel (%p88) target = $region12
      $region11: #{tpu_custom_call.1} parent=5 // pred_region
        %s92 = ssub.s32 %s10, 1
      $region12: #{tpu_custom_call.1} parent=5 // pred_fallthru
        _
      %p93 = scmp.lt.s32.totalorder %s10, 2
      // Predicated region
      $region13: #{tpu_custom_call.1} parent=5 // pred_check
        %p94 = pneg %p93
      $region14: #{tpu_custom_call.1} parent=5 // pred_check_branch
        %96 = sbr.rel (%p94) target = $region16
      $region15: #{tpu_custom_call.1} parent=5 // pred_region
        // Predicated region
        $region17: #{tpu_custom_call.1} parent=15 // pred_check
          %p97 = pneg %p44
        $region18: #{tpu_custom_call.1} parent=15 // pred_check_branch
          %99 = sbr.rel (%p97) target = $region20
        $region19: #{tpu_custom_call.1} parent=15 // pred_region
          %s100 = sand.u32 %s34, 1
          %s101 = scalar_lea.sflag [#allocation3], %s100
          %s102 = sand.u32 %s34, 1
          %s103 = smul.addr %s102, 8
          %s104 = scalar_lea.vmem [#allocation2], %s103
          %s106 = ssub.s32 128, 128
          %107 = vsyncadd %s101, %s106
          %s108 = smul.addr %s18, 2
          %s109 = smul.addr %s17, 2
          %s110 = sadd.s32 %s108, %s109
          %s111 = smul.addr %s110, 64
          %s112 = scalar_lea.hbm %s0, %s111
          %s114 = sshll.u32 %s104, 4
          %s115 = int_to_ptr.vmem [resolvable:$true] %s114
          %117 = dma.hbm_to_vmem [thread:$0]  %s112, 128, %s115, %s101
        $region20: #{tpu_custom_call.1} parent=15 // pred_fallthru
          _
      $region16: #{tpu_custom_call.1} parent=5 // pred_fallthru
        _
      %p118 = scmp.le.s32.totalorder 1, %s10
      %p119 = scmp.lt.s32.totalorder %s10, 3
      %p120 = pnand %p118, %p119
      %p121 = pneg %p120
      // Predicated region
      $region21: #{tpu_custom_call.1} parent=5 // pred_check
        _
      $region22: #{tpu_custom_call.1} parent=5 // pred_check_branch
        %123 = sbr.rel (%p120) target = $region24
      $region23: #{tpu_custom_call.1} parent=5 // pred_region
        %s124 = ssub.s32 %s10, 1
        %s125 = sand.u32 %s37, 1
        %s126 = scalar_lea.sflag [#allocation3], %s125
        %s127 = sand.u32 %s37, 1
        %s128 = smul.addr %s127, 8
        %s129 = scalar_lea.vmem [#allocation2], %s128
        // Predicated region
        $region25: #{tpu_custom_call.1} parent=23 // pred_check
          %p130 = pneg %p50
        $region26: #{tpu_custom_call.1} parent=23 // pred_check_branch
          %132 = sbr.rel (%p130) target = $region28
        $region27: #{tpu_custom_call.1} parent=23 // pred_region
          %133 = dma.done %s126, 128
        $region28: #{tpu_custom_call.1} parent=23 // pred_fallthru
          _
        %s134 = sand.u32 %s37, 1
        %s135 = scalar_lea.sflag [#allocation3], %s134
        %s136 = sand.u32 %s37, 1
        %s137 = smul.addr %s136, 8
        %s138 = scalar_lea.vmem [#allocation2], %s137
        %p139 = pneg %p50
        %p140 = pneg %p47
        %p141 = pneg %p78
        %p142 = pneg %p75
        %p143 = scmp.lt.s32.totalorder %s19, 1
        %s144 = scalar_select %p143, %s19, 1
        %p145 = scmp.lt.s32.totalorder %s20, 0
        %s146 = scalar_select %p145, %s20, 0
        %s147 = sadd.s32 %s146, %s144
        %s148 = smul.addr %s147, 4
        %s149 = scalar_lea.vmem %s1, %s148
        %p150 = scmp.lt.s32.totalorder %s19, 1
        %s151 = scalar_select %p150, %s19, 1
        %p152 = scmp.lt.s32.totalorder %s20, 0
        %s153 = scalar_select %p152, %s20, 0
        %s154 = sadd.s32 %s153, %s151
        %s155 = smul.addr %s154, 4
        %s156 = scalar_lea.vmem %s1, %s155
        %v157 = vld [vmem:[%s129] sm:$0xff]
        %v158 = vmax.f32 %v157, 1e-06
        %v159 = vmin.f32 %v158, 10000.0
        %v160 = vlog2.pop %v159
        %v161 = vmul.f32 %v160, 0.6931472
        %v162 = vmul.f32 %v161, 3.74
        %v163 = vmul.f32 %v162, 1.442695
        %v164 = vpow.pop %v163
        %v166 = vcombine.high %v164, %v164
        %vm168 = vcmask 1043456
        %v169 = vsel %vm168, %v164, 0.0
        %v170 = vsel %vm168, %v166, 0.0
        %v171 = vadd.f32 %v169, %v170
        %172 = vadd.xlane.f32.xlu0 %v171
        %v173 = vpop.xlane.xlu0 %172
        %v174 = vmul.f32 %v173, 0.00390625
        %v175 = vlog2.pop %v174
        %v176 = vmul.f32 %v175, 0.6931472
        %v177 = vmul.f32 %v176, 0.26737967
        %v178 = vmul.f32 %v177, 1.442695
        %v179 = vpow.pop %v178
        %v180 = vand.u32 2147483647, %v179
        %vm181 = vcmask 3072
        %182 = vst.msk [vmem:[%s156] sm:$0xf] %vm181, %v180
        %p183 = scmp.lt.s32.totalorder %s19, 1
        %s184 = scalar_select %p183, %s19, 1
        %p185 = scmp.lt.s32.totalorder %s20, 0
        %s186 = scalar_select %p185, %s20, 0
        %s187 = sadd.s32 %s186, %s184
        %s188 = smul.addr %s187, 4
        %s189 = scalar_lea.vmem %s1, %s188
        // Predicated region
        $region29: #{tpu_custom_call.1} parent=23 // pred_check
          %p190 = pneg %p75
        $region30: #{tpu_custom_call.1} parent=23 // pred_check_branch
          %192 = sbr.rel (%p190) target = $region32
        $region31: #{tpu_custom_call.1} parent=23 // pred_region
          _
        $region32: #{tpu_custom_call.1} parent=23 // pred_fallthru
          _
      $region24: #{tpu_custom_call.1} parent=5 // pred_fallthru
        _
      %p193 = scmp.le.s32.totalorder 2, %s10
      // Predicated region
      $region33: #{tpu_custom_call.1} parent=5 // pred_check
        %p194 = pneg %p193
      $region34: #{tpu_custom_call.1} parent=5 // pred_check_branch
        %196 = sbr.rel (%p194) target = $region36
      $region35: #{tpu_custom_call.1} parent=5 // pred_region
        %s197 = ssub.s32 %s10, 2
        // Predicated region
        $region37: #{tpu_custom_call.1} parent=35 // pred_check
          %p198 = pneg %p81
        $region38: #{tpu_custom_call.1} parent=35 // pred_check_branch
          %200 = sbr.rel (%p198) target = $region40
        $region39: #{tpu_custom_call.1} parent=35 // pred_region
          %p201 = scmp.lt.s32.totalorder %s21, 1
          %s202 = scalar_select %p201, %s21, 1
          %p203 = scmp.lt.s32.totalorder %s22, 0
          %s204 = scalar_select %p203, %s22, 0
          %s205 = sadd.s32 %s204, %s202
          %s206 = smul.addr %s205, 4
          %s207 = scalar_lea.vmem %s1, %s206
        $region40: #{tpu_custom_call.1} parent=35 // pred_fallthru
          _
      $region36: #{tpu_custom_call.1} parent=5 // pred_fallthru
        _
    $region6: #{tpu_custom_call.1} parent=1 // loop_footer
      %s14 = sadd.s32 1, %s10
    $region7: #{tpu_custom_call.1} parent=1 // loop_footer_branch
      %9 = sbr.rel target = $region3
    $region8: #{tpu_custom_call.1} parent=1 // loop_exit
      _
    %208 = vsyncpa [#allocation3], 1
    %s209 = scalar_lea.sflag [#allocation3], 1
    %210 = vsyncpa %s209, 1

</llo_original>
